<compile_context>
chip_gen: v6e
topology: v6e:2x2x1
jax: 0.10.0
libtpu: 0.0.40
codegen_flags: <defaults>
</compile_context>

<pallas_src>
import jax
import jax.numpy as jnp
from jax.experimental import pallas as pl
from jax.experimental.pallas import tpu as pltpu

K = 3            # pooling window == stride (nn.MaxPool2d(3, ceil_mode=True))
KK = K * K


def _maxpool_kernel(x_ref, o_ref):
    # x_ref block: (9, b_nc, s_blk); o_ref block: (b_nc, s_blk).
    # Leading-axis ref slices are cheap views -- never load the whole 9x block.
    acc = jnp.maximum(x_ref[0], x_ref[1])
    for t in range(2, KK):
        acc = jnp.maximum(acc, x_ref[t])
    o_ref[...] = acc


def _round_up(x, m):
    return -(-x // m) * m


def _vmem_capacity_bytes():
    """Physical VMEM per core, with a conservative (v7x-sized) fallback."""
    try:
        cap = getattr(pltpu.get_tpu_info(), "vmem_capacity_bytes", None)
        if cap:
            return int(cap)
    except Exception:
        pass
    return 64 * 1024 * 1024


def _pick_blocks(nc, s, itemsize, target_in_bytes, min_steps):
    """Choose (b_nc, nc_pad, s_blk, s_pad).

    s_blk is the full spatial axis or a multiple of 128 (lane-dense, unmasked
    stores); b_nc is the full channel axis (nc < 8) or a multiple of 8 (dtype-dense
    sublanes when possible); the padded array divides evenly into blocks; total grid
    steps >= min_steps whenever blocks can stay >= 512 KiB.
    """
    # ---- lane (flattened spatial) block ----
    min_sub = min(nc, 8)
    if KK * min_sub * s * itemsize <= target_in_bytes:
        s_blk, s_pad = s, s                         # whole spatial axis per block
    else:
        s_blk = target_in_bytes // (KK * min_sub * itemsize)
        s_blk = max(128, (s_blk // 128) * 128)      # multiple of 128
        s_blk = min(s_blk, _round_up(s, 128))
        g_s = -(-s // s_blk)                        # rebalance to minimize padding
        s_blk = min(s_blk, _round_up(-(-s // g_s), 128))
        s_pad = _round_up(s, s_blk)
    grid_s = s_pad // s_blk

    # ---- sublane (N*C) block ----
    if nc < 8:
        b_nc = nc                                   # full dim (allowed by tiling rules)
    else:
        unit = 8 * max(1, 4 // itemsize)            # 8 f32 / 16 bf16 / 32 int8 sublanes
        max_b = max(8, target_in_bytes // (KK * s_blk * itemsize))
        b_nc = min(nc, max_b)
        b_nc = (b_nc // unit) * unit or (b_nc // 8) * 8
        # v7x: want >= min_steps grid steps (>= 4 per TensorCore) so each core's
        # pipeline has an i+1 block to prefetch; only split while blocks stay big
        # enough (>= 512 KiB) that DMA efficiency is not hurt.
        min_block = 512 * 1024
        while (-(-nc // b_nc) * grid_s < min_steps and b_nc > 8
               and KK * (b_nc // 2) * s_blk * itemsize >= min_block):
            b_nc = max(8, ((b_nc // 2) // 8) * 8)
        # Rebalance: same number of channel blocks, minimal padded channels.
        g = -(-nc // b_nc)
        b_nc = min(b_nc, _round_up(-(-nc // g), 8))
    nc_pad = _round_up(nc, b_nc)
    return b_nc, nc_pad, s_blk, s_pad


def maxpool2d_ceil(x):
    """nn.MaxPool2d(3, ceil_mode=True) over NCHW input."""
    N, C, H, W = x.shape
    h_out = -(-H // K)
    w_out = -(-W // K)
    Hp, Wp = h_out * K, w_out * K
    nc, S = N * C, h_out * w_out
    itemsize = jnp.dtype(x.dtype).itemsize

    if jnp.issubdtype(x.dtype, jnp.floating):
        neg = float("-inf")
    else:
        neg = int(jnp.iinfo(x.dtype).min)

    # Per-generation sizing: v5e/v6e (128 MiB VMEM) get big blocks / high limit;
    # v7x (64 MiB per TC, 2 TCs) gets smaller blocks, a lower limit and >= 8 steps.
    cap = _vmem_capacity_bytes()
    if cap >= 100 * 1024 * 1024:
        vmem_limit, target_in, min_steps = 64 * 2**20, 12 * 2**20, 2
    else:
        vmem_limit, target_in, min_steps = 40 * 2**20, 8 * 2**20, 8

    b_nc, nc_pad, s_blk, s_pad = _pick_blocks(nc, S, itemsize, target_in, min_steps)

    # Single relayout pass (pad + reshape + transpose, fused by XLA): taps outermost,
    # channels on the sublane axis, flattened spatial on the lane axis.
    # TODO(synk): fold this relayout into the kernel (read natural (nc, H, W) blocks
    # and do the 3x3 taps with strided in-kernel slices) to drop the extra HBM pass.
    xr = x.reshape(nc, H, W)
    if (nc_pad, Hp, Wp) != (nc, H, W):
        xr = jnp.pad(xr, ((0, nc_pad - nc), (0, Hp - H), (0, Wp - W)),
                     constant_values=neg)
    xr = (xr.reshape(nc_pad, h_out, K, w_out, K)
            .transpose(2, 4, 0, 1, 3)
            .reshape(KK, nc_pad, S))
    if s_pad != S:
        xr = jnp.pad(xr, ((0, 0), (0, 0), (0, s_pad - S)), constant_values=neg)

    grid = (nc_pad // b_nc, s_pad // s_blk)
    out = pl.pallas_call(
        _maxpool_kernel,
        out_shape=jax.ShapeDtypeStruct((nc_pad, s_pad), x.dtype),
        grid=grid,
        in_specs=[pl.BlockSpec((KK, b_nc, s_blk), lambda i, j: (0, i, j))],
        out_specs=pl.BlockSpec((b_nc, s_blk), lambda i, j: (i, j)),
        compiler_params=pltpu.CompilerParams(
            dimension_semantics=("parallel", "parallel"),
            vmem_limit_bytes=vmem_limit,
        ),
    )(xr)

    if (nc_pad, s_pad) != (nc, S):
        out = out[:nc, :S]
    return out.reshape(N, C, h_out, w_out)


if __name__ == "__main__":
    key = jax.random.PRNGKey(0)
    x = jax.random.normal(key, (2, 4, 16, 16), dtype=jnp.float32)

    fn = jax.jit(maxpool2d_ceil)
    y = jax.block_until_ready(fn(x))

    # Pure-JAX reference with the same ceil_mode semantics.
    N, C, H, W = x.shape
    h_out, w_out = -(-H // K), -(-W // K)
    xp = jnp.pad(x, ((0, 0), (0, 0), (0, h_out * K - H), (0, w_out * K - W)),
                 constant_values=-jnp.inf)
    ref = jnp.max(xp.reshape(N, C, h_out, K, w_out, K), axis=(3, 5))

    assert y.shape == (2, 4, 6, 6), y.shape
    assert y.dtype == x.dtype
    assert jnp.allclose(y, ref), "mismatch vs reference"

    print("KERNEL_OK")
</pallas_src>

<mosaic_0001>
module attributes {stable_mosaic.version = 11 : i64} {
  func.func @_maxpool_kernel(%arg0: i32, %arg1: i32, %arg2: memref<9x8x36xf32, #tpu.memory_space<vmem>>, %arg3: memref<8x36xf32, #tpu.memory_space<vmem>>) attributes {dimension_semantics = [#tpu.dimension_semantics<parallel>, #tpu.dimension_semantics<parallel>], iteration_bounds = array<i64: 1, 1>, scalar_prefetch = 0 : i64, scratch_operands = 0 : i64, tpu.core_type = #tpu.core_type<tc>, window_params = [{transform_indices = @transform_0, window_bounds = array<i64: 9, 8, 36>}, {transform_indices = @transform_1, window_bounds = array<i64: 8, 36>}]} {
    %c0 = arith.constant 0 : index
    %c0_0 = arith.constant 0 : index
    %c0_1 = arith.constant 0 : index
    %0 = vector.load %arg2[%c0, %c0_0, %c0_1] : memref<9x8x36xf32, #tpu.memory_space<vmem>>, vector<1x8x36xf32>
    %1 = vector.shape_cast %0 : vector<1x8x36xf32> to vector<8x36xf32>
    %c1 = arith.constant 1 : index
    %c0_2 = arith.constant 0 : index
    %c0_3 = arith.constant 0 : index
    %2 = vector.load %arg2[%c1, %c0_2, %c0_3] : memref<9x8x36xf32, #tpu.memory_space<vmem>>, vector<1x8x36xf32>
    %3 = vector.shape_cast %2 : vector<1x8x36xf32> to vector<8x36xf32>
    %4 = arith.maximumf %1, %3 : vector<8x36xf32>
    %c2 = arith.constant 2 : index
    %c0_4 = arith.constant 0 : index
    %c0_5 = arith.constant 0 : index
    %5 = vector.load %arg2[%c2, %c0_4, %c0_5] : memref<9x8x36xf32, #tpu.memory_space<vmem>>, vector<1x8x36xf32>
    %6 = vector.shape_cast %5 : vector<1x8x36xf32> to vector<8x36xf32>
    %7 = arith.maximumf %4, %6 : vector<8x36xf32>
    %c3 = arith.constant 3 : index
    %c0_6 = arith.constant 0 : index
    %c0_7 = arith.constant 0 : index
    %8 = vector.load %arg2[%c3, %c0_6, %c0_7] : memref<9x8x36xf32, #tpu.memory_space<vmem>>, vector<1x8x36xf32>
    %9 = vector.shape_cast %8 : vector<1x8x36xf32> to vector<8x36xf32>
    %10 = arith.maximumf %7, %9 : vector<8x36xf32>
    %c4 = arith.constant 4 : index
    %c0_8 = arith.constant 0 : index
    %c0_9 = arith.constant 0 : index
    %11 = vector.load %arg2[%c4, %c0_8, %c0_9] : memref<9x8x36xf32, #tpu.memory_space<vmem>>, vector<1x8x36xf32>
    %12 = vector.shape_cast %11 : vector<1x8x36xf32> to vector<8x36xf32>
    %13 = arith.maximumf %10, %12 : vector<8x36xf32>
    %c5 = arith.constant 5 : index
    %c0_10 = arith.constant 0 : index
    %c0_11 = arith.constant 0 : index
    %14 = vector.load %arg2[%c5, %c0_10, %c0_11] : memref<9x8x36xf32, #tpu.memory_space<vmem>>, vector<1x8x36xf32>
    %15 = vector.shape_cast %14 : vector<1x8x36xf32> to vector<8x36xf32>
    %16 = arith.maximumf %13, %15 : vector<8x36xf32>
    %c6 = arith.constant 6 : index
    %c0_12 = arith.constant 0 : index
    %c0_13 = arith.constant 0 : index
    %17 = vector.load %arg2[%c6, %c0_12, %c0_13] : memref<9x8x36xf32, #tpu.memory_space<vmem>>, vector<1x8x36xf32>
    %18 = vector.shape_cast %17 : vector<1x8x36xf32> to vector<8x36xf32>
    %19 = arith.maximumf %16, %18 : vector<8x36xf32>
    %c7 = arith.constant 7 : index
    %c0_14 = arith.constant 0 : index
    %c0_15 = arith.constant 0 : index
    %20 = vector.load %arg2[%c7, %c0_14, %c0_15] : memref<9x8x36xf32, #tpu.memory_space<vmem>>, vector<1x8x36xf32>
    %21 = vector.shape_cast %20 : vector<1x8x36xf32> to vector<8x36xf32>
    %22 = arith.maximumf %19, %21 : vector<8x36xf32>
    %c8 = arith.constant 8 : index
    %c0_16 = arith.constant 0 : index
    %c0_17 = arith.constant 0 : index
    %23 = vector.load %arg2[%c8, %c0_16, %c0_17] : memref<9x8x36xf32, #tpu.memory_space<vmem>>, vector<1x8x36xf32>
    %24 = vector.shape_cast %23 : vector<1x8x36xf32> to vector<8x36xf32>
    %25 = arith.maximumf %22, %24 : vector<8x36xf32>
    %c0_18 = arith.constant 0 : index
    %c0_19 = arith.constant 0 : index
    %26 = vector.load %arg3[%c0_18, %c0_19] : memref<8x36xf32, #tpu.memory_space<vmem>>, vector<8x36xf32>
    tpu.vector_store %arg3[%c0_18, %c0_19], %25 {strides = array<i32>} : memref<8x36xf32, #tpu.memory_space<vmem>>, vector<8x36xf32>,
    return
  }
  func.func @transform_0(%arg0: i32, %arg1: i32) -> (i32, i32, i32) {
    %c0_i32 = arith.constant 0 : i32
    %c0_i32_0 = arith.constant 0 : i32
    return %c0_i32, %arg0, %arg1 : i32, i32, i32
  }
  func.func @transform_1(%arg0: i32, %arg1: i32) -> (i32, i32) {
    %c0_i32 = arith.constant 0 : i32
    return %arg0, %arg1 : i32, i32
  }
}

</mosaic_0001>

<llo_original>
// kernel: maxpool2d_ceil.1
$region0: #{maxpool2d_ceil.1}
  #allocation0 [shape = 'u32[]', space=smem, size = 0x4, offset = 0x4, fixed_abs, tag = 'smem constant byte address 0x4 - core index']
  #allocation1 [shape = 'u32[144,128]{1,0:T(1,128)}', space=vmem, size = 0x12000, scoped, tag = 'internal scratch']
  %s0 = inlined_call_operand.vmem [shape: f32[9,8,36], index: 0, kind: input, shape index: {}]
  %s1 = inlined_call_operand.vmem [shape: f32[8,36], index: 1, kind: output, shape index: {}]
  %s2 = sld [smem:[#allocation0]]
  $region14: #{maxpool2d_ceil.1} parent=0
    _
  %s4 = ssub.s32 1, %s2
  %s5 = scalar_select 0, %s4, %s2
  // Predicated region
  $region2: #{maxpool2d_ceil.1} parent=0 // pred_check
    _
  $region3: #{maxpool2d_ceil.1} parent=0 // pred_check_branch
    %7 = sbr.rel (0) target = $region5
  $region4: #{maxpool2d_ceil.1} parent=0 // pred_region
    _
  $region5: #{maxpool2d_ceil.1} parent=0 // pred_fallthru
    _
  %v8 = vld [vmem:[%s0] sm:$0xff]
  %s9 = scalar_lea.vmem %s0, 8
  %v10 = vld [vmem:[%s9] sm:$0xff]
  %v11 = vmax.f32 %v8, %v10
  %s12 = scalar_lea.vmem %s0, 16
  %v13 = vld [vmem:[%s12] sm:$0xff]
  %v14 = vmax.f32 %v11, %v13
  %s15 = scalar_lea.vmem %s0, 24
  %v16 = vld [vmem:[%s15] sm:$0xff]
  %v17 = vmax.f32 %v14, %v16
  %s18 = scalar_lea.vmem %s0, 32
  %v19 = vld [vmem:[%s18] sm:$0xff]
  %v20 = vmax.f32 %v17, %v19
  %s21 = scalar_lea.vmem %s0, 40
  %v22 = vld [vmem:[%s21] sm:$0xff]
  %v23 = vmax.f32 %v20, %v22
  %s24 = scalar_lea.vmem %s0, 48
  %v25 = vld [vmem:[%s24] sm:$0xff]
  %v26 = vmax.f32 %v23, %v25
  %s27 = scalar_lea.vmem %s0, 56
  %v28 = vld [vmem:[%s27] sm:$0xff]
  %v29 = vmax.f32 %v26, %v28
  %s30 = scalar_lea.vmem %s0, 64
  %v31 = vld [vmem:[%s30] sm:$0xff]
  %v32 = vmax.f32 %v29, %v31
  %vm33 = vcmask 293888
  %34 = vst.msk [vmem:[%s1] sm:$0xff] %vm33, %v32
  // Predicated region
  $region6: #{maxpool2d_ceil.1} parent=0 // pred_check
    _
  $region7: #{maxpool2d_ceil.1} parent=0 // pred_check_branch
    %36 = sbr.rel (0) target = $region9
  $region8: #{maxpool2d_ceil.1} parent=0 // pred_region
    _
  $region9: #{maxpool2d_ceil.1} parent=0 // pred_fallthru
    _
  // Predicated region
  $region10: #{maxpool2d_ceil.1} parent=0 // pred_check
    _
  $region11: #{maxpool2d_ceil.1} parent=0 // pred_check_branch
    %38 = sbr.rel (0) target = $region13
  $region12: #{maxpool2d_ceil.1} parent=0 // pred_region
    _
  $region13: #{maxpool2d_ceil.1} parent=0 // pred_fallthru
    _

</llo_original>
